<compile_context>
chip_gen: v7x
topology: tpu7x:2x2x1
jax: 0.10.0
libtpu: 0.0.40
codegen_flags: <defaults>
</compile_context>

<pallas_src>
import jax
import jax.numpy as jnp
from jax.experimental import pallas as pl
from jax.experimental.pallas import tpu as pltpu


BN_EPS = 1e-5
H1_PAD = 128   # fc1 width 120 padded to 128 lanes
H2_PAD = 128   # fc2 width 60 padded to 128 lanes
OUT_PAD = 128  # fc3 width padded to 128 lanes (lane-dense output stores)


def _round_up(x, m):
    return ((x + m - 1) // m) * m


def actor_kernel(x_ref, w1_ref, w2_ref, w3_ref, bias_ref, o_ref):
    """Whole (BN-folded) MLP forward for one batch tile, entirely in VMEM."""
    x = x_ref[...]                              # (TB, dim_in), f32 or bf16

    b1 = bias_ref[0:1, :]                       # (1, 128) f32
    b2 = bias_ref[1:2, :]
    b3 = bias_ref[2:3, :]

    # fc1 (BN folded in) + ReLU.  Dropout (eval) = identity.
    h1 = jnp.dot(x, w1_ref[...], preferred_element_type=jnp.float32) + b1
    h1 = jnp.maximum(h1, 0.0)                   # (TB, 128) f32; pad lanes stay 0

    # fc2 + ReLU.  Dropout (eval) = identity.
    h2 = jnp.dot(h1.astype(w2_ref.dtype), w2_ref[...],
                 preferred_element_type=jnp.float32) + b2
    h2 = jnp.maximum(h2, 0.0)                   # (TB, 128) f32

    # fc3 + tanh.
    h3 = jnp.dot(h2.astype(w3_ref.dtype), w3_ref[...],
                 preferred_element_type=jnp.float32) + b3
    o_ref[...] = jnp.tanh(h3).astype(o_ref.dtype)   # (TB, 128); pad lanes = 0


def actor_forward(x, params, *, block_b=1024, weight_dtype=jnp.float32):
    """Eval-mode Actor forward.

    x: (B, dim_in) float32.  Returns (B, dim_out) float32.
    weight_dtype=jnp.bfloat16 halves weight/x HBM traffic on v6e/v7x; the
    elementwise tail (bias add / ReLU / tanh) always runs in f32.
    """
    B, dim_in = x.shape
    dim_out = params["w3"].shape[1]

    # ---- host-side: fold BatchNorm (running stats) into fc1 -----------------
    scale = params["gamma"][0] * jax.lax.rsqrt(params["rvar"][0] + BN_EPS)   # (dim_in,)
    shift = params["beta"][0] - params["rmean"][0] * scale                   # (dim_in,)
    w1f = scale[:, None] * params["w1"]                                      # (dim_in, 120)
    b1f = params["b1"][0] + shift @ params["w1"]                             # (120,)

    # ---- host-side: zero-pad hidden / output dims to 128 lanes --------------
    def pad2(a, rows, cols):
        return jnp.pad(a, ((0, rows - a.shape[0]), (0, cols - a.shape[1])))

    w1p = pad2(w1f, dim_in, H1_PAD).astype(weight_dtype)           # (dim_in, 128)
    w2p = pad2(params["w2"], H1_PAD, H2_PAD).astype(weight_dtype)  # (128, 128)
    w3p = pad2(params["w3"], H2_PAD, OUT_PAD).astype(weight_dtype) # (128, 128)
    bias = jnp.stack([
        jnp.pad(b1f, (0, H1_PAD - b1f.shape[0])),
        jnp.pad(params["b2"][0], (0, H2_PAD - params["b2"].shape[1])),
        jnp.pad(params["b3"][0], (0, OUT_PAD - dim_out)),
    ]).astype(jnp.float32)                                         # (3, 128)

    # ---- batch tiling: big tiles, pad batch instead of forcing divisibility -
    bp = min(_round_up(int(block_b), 8), _round_up(B, 8))
    Bp = _round_up(B, bp)
    xin = x.astype(weight_dtype)
    if Bp != B:
        xin = jnp.pad(xin, ((0, Bp - B), (0, 0)))
    grid = (Bp // bp,)

    # VMEM budget (double-buffered operands + activation headroom), with margin.
    itemsize = jnp.dtype(weight_dtype).itemsize
    est = (2 * bp * (dim_in * itemsize + OUT_PAD * 4)
           + 2 * (dim_in * H1_PAD + H1_PAD * H2_PAD + H2_PAD * OUT_PAD) * itemsize
           + 2 * 3 * 128 * 4
           + 4 * bp * 128 * 4)
    vmem_limit = int(min(max(2 * est, 16 * 1024 * 1024), 48 * 1024 * 1024))

    full = lambda shape: pl.BlockSpec(shape, lambda i: (0, 0))

    grid_spec = pltpu.PrefetchScalarGridSpec(
        num_scalar_prefetch=0,
        grid=grid,
        in_specs=[
            pl.BlockSpec((bp, dim_in), lambda i: (i, 0)),   # x tile
            full((dim_in, H1_PAD)),                         # w1 (BN-folded, padded)
            full((H1_PAD, H2_PAD)),                         # w2 (padded)
            full((H2_PAD, OUT_PAD)),                        # w3 (padded)
            full((3, OUT_PAD)),                             # packed biases
        ],
        out_specs=pl.BlockSpec((bp, OUT_PAD), lambda i: (i, 0)),
    )

    out_padded = pl.pallas_call(
        actor_kernel,
        out_shape=jax.ShapeDtypeStruct((Bp, OUT_PAD), jnp.float32),
        grid_spec=grid_spec,
        compiler_params=pltpu.CompilerParams(
            dimension_semantics=("parallel",),
            vmem_limit_bytes=vmem_limit),
    )(xin, w1p, w2p, w3p, bias)

    return out_padded[:B, :dim_out]


def init_params(key, dim_in, dim_out):
    """Deterministic init mimicking PyTorch defaults (uniform +-1/sqrt(fan_in))."""
    keys = jax.random.split(key, 8)

    def linear(kw, kb, fan_in, fan_out):
        bound = 1.0 / jnp.sqrt(float(fan_in))
        w = jax.random.uniform(kw, (fan_in, fan_out), jnp.float32, -bound, bound)
        b = jax.random.uniform(kb, (1, fan_out), jnp.float32, -bound, bound)
        return w, b

    w1, b1 = linear(keys[0], keys[1], dim_in, 120)
    w2, b2 = linear(keys[2], keys[3], 120, 60)
    w3, b3 = linear(keys[4], keys[5], 60, dim_out)

    gamma = 1.0 + 0.1 * jax.random.normal(keys[6], (1, dim_in), jnp.float32)
    beta = 0.05 * jax.random.normal(keys[7], (1, dim_in), jnp.float32)
    rmean = jnp.linspace(-0.1, 0.1, dim_in, dtype=jnp.float32).reshape(1, dim_in)
    rvar = jnp.linspace(0.8, 1.2, dim_in, dtype=jnp.float32).reshape(1, dim_in)

    return dict(w1=w1, b1=b1, w2=w2, b2=b2, w3=w3, b3=b3,
                gamma=gamma, beta=beta, rmean=rmean, rvar=rvar)


def actor_reference(x, p):
    """Pure-JAX reference (eval-mode) for correctness check."""
    xn = (x - p["rmean"]) / jnp.sqrt(p["rvar"] + BN_EPS) * p["gamma"] + p["beta"]
    h1 = jnp.maximum(xn @ p["w1"] + p["b1"], 0.0)
    h2 = jnp.maximum(h1 @ p["w2"] + p["b2"], 0.0)
    return jnp.tanh(h2 @ p["w3"] + p["b3"])


if __name__ == "__main__":
    dim_in, dim_out, batch = 4, 2, 8

    key = jax.random.PRNGKey(0)
    k_x, k_p = jax.random.split(key)
    x = jax.random.normal(k_x, (batch, dim_in), jnp.float32)
    params = init_params(k_p, dim_in, dim_out)

    out = actor_forward(x, params)          # tiny batch => single grid step
    out = jax.block_until_ready(out)

    ref = actor_reference(x, params)
    assert out.shape == (batch, dim_out)
    assert jnp.allclose(out, ref, atol=2e-5, rtol=2e-5), (out, ref)

    print("KERNEL_OK")
</pallas_src>

<mosaic_0001>
module attributes {stable_mosaic.version = 11 : i64} {
  func.func @actor_kernel(%arg0: i32, %arg1: memref<8x4xf32, #tpu.memory_space<vmem>>, %arg2: memref<4x128xf32, #tpu.memory_space<vmem>>, %arg3: memref<128x128xf32, #tpu.memory_space<vmem>>, %arg4: memref<128x128xf32, #tpu.memory_space<vmem>>, %arg5: memref<3x128xf32, #tpu.memory_space<vmem>>, %arg6: memref<8x128xf32, #tpu.memory_space<vmem>>) attributes {dimension_semantics = [#tpu.dimension_semantics<parallel>], iteration_bounds = array<i64: 1>, scalar_prefetch = 0 : i64, scratch_operands = 0 : i64, tpu.core_type = #tpu.core_type<tc>, window_params = [{transform_indices = @transform_0, window_bounds = array<i64: 8, 4>}, {pipeline_mode = #tpu.pipeline_mode<synchronous>, transform_indices = @transform_1, window_bounds = array<i64: 4, 128>}, {pipeline_mode = #tpu.pipeline_mode<synchronous>, transform_indices = @transform_2, window_bounds = array<i64: 128, 128>}, {pipeline_mode = #tpu.pipeline_mode<synchronous>, transform_indices = @transform_3, window_bounds = array<i64: 128, 128>}, {pipeline_mode = #tpu.pipeline_mode<synchronous>, transform_indices = @transform_4, window_bounds = array<i64: 3, 128>}, {transform_indices = @transform_5, window_bounds = array<i64: 8, 128>}]} {
    %c0 = arith.constant 0 : index
    %c0_0 = arith.constant 0 : index
    %0 = vector.load %arg1[%c0, %c0_0] : memref<8x4xf32, #tpu.memory_space<vmem>>, vector<8x4xf32>
    %c0_1 = arith.constant 0 : index
    %c0_2 = arith.constant 0 : index
    %1 = vector.load %arg5[%c0_1, %c0_2] : memref<3x128xf32, #tpu.memory_space<vmem>>, vector<1x128xf32>
    %c1 = arith.constant 1 : index
    %c0_3 = arith.constant 0 : index
    %2 = vector.load %arg5[%c1, %c0_3] : memref<3x128xf32, #tpu.memory_space<vmem>>, vector<1x128xf32>
    %c2 = arith.constant 2 : index
    %c0_4 = arith.constant 0 : index
    %3 = vector.load %arg5[%c2, %c0_4] : memref<3x128xf32, #tpu.memory_space<vmem>>, vector<1x128xf32>
    %c0_5 = arith.constant 0 : index
    %c0_6 = arith.constant 0 : index
    %4 = vector.load %arg2[%c0_5, %c0_6] : memref<4x128xf32, #tpu.memory_space<vmem>>, vector<4x128xf32>
    %cst = arith.constant dense<0.000000e+00> : vector<8x128xf32>
    %5 = tpu.matmul %0, %4, %cst {dimension_numbers = #tpu.dot_dimension_numbers<[1], [0], [0], [1], [0, 0, 1, 1], [], []>} : vector<8x4xf32>, vector<4x128xf32>, vector<8x128xf32> -> vector<8x128xf32>
    %6 = vector.broadcast %1 : vector<1x128xf32> to vector<8x128xf32>
    %7 = arith.addf %5, %6 : vector<8x128xf32>
    %cst_7 = arith.constant 0.000000e+00 : f32
    %8 = vector.broadcast %cst_7 : f32 to vector<8x128xf32>
    %9 = arith.maximumf %7, %8 : vector<8x128xf32>
    %c0_8 = arith.constant 0 : index
    %c0_9 = arith.constant 0 : index
    %10 = vector.load %arg3[%c0_8, %c0_9] : memref<128x128xf32, #tpu.memory_space<vmem>>, vector<128x128xf32>
    %cst_10 = arith.constant dense<0.000000e+00> : vector<8x128xf32>
    %11 = tpu.matmul %9, %10, %cst_10 {dimension_numbers = #tpu.dot_dimension_numbers<[1], [0], [0], [1], [0, 0, 1, 1], [], []>} : vector<8x128xf32>, vector<128x128xf32>, vector<8x128xf32> -> vector<8x128xf32>
    %12 = vector.broadcast %2 : vector<1x128xf32> to vector<8x128xf32>
    %13 = arith.addf %11, %12 : vector<8x128xf32>
    %cst_11 = arith.constant 0.000000e+00 : f32
    %14 = vector.broadcast %cst_11 : f32 to vector<8x128xf32>
    %15 = arith.maximumf %13, %14 : vector<8x128xf32>
    %c0_12 = arith.constant 0 : index
    %c0_13 = arith.constant 0 : index
    %16 = vector.load %arg4[%c0_12, %c0_13] : memref<128x128xf32, #tpu.memory_space<vmem>>, vector<128x128xf32>
    %cst_14 = arith.constant dense<0.000000e+00> : vector<8x128xf32>
    %17 = tpu.matmul %15, %16, %cst_14 {dimension_numbers = #tpu.dot_dimension_numbers<[1], [0], [0], [1], [0, 0, 1, 1], [], []>} : vector<8x128xf32>, vector<128x128xf32>, vector<8x128xf32> -> vector<8x128xf32>
    %18 = vector.broadcast %3 : vector<1x128xf32> to vector<8x128xf32>
    %19 = arith.addf %17, %18 : vector<8x128xf32>
    %20 = math.tanh %19 : vector<8x128xf32>
    %c0_15 = arith.constant 0 : index
    %c0_16 = arith.constant 0 : index
    %21 = vector.load %arg6[%c0_15, %c0_16] : memref<8x128xf32, #tpu.memory_space<vmem>>, vector<8x128xf32>
    tpu.vector_store %arg6[%c0_15, %c0_16], %20 {strides = array<i32>} : memref<8x128xf32, #tpu.memory_space<vmem>>, vector<8x128xf32>,
    return
  }
  func.func @transform_0(%arg0: i32) -> (i32, i32) {
    %c0_i32 = arith.constant 0 : i32
    %c0_i32_0 = arith.constant 0 : i32
    return %arg0, %c0_i32 : i32, i32
  }
  func.func @transform_1(%arg0: i32) -> (i32, i32) {
    %c0_i32 = arith.constant 0 : i32
    %c0_i32_0 = arith.constant 0 : i32
    %c0_i32_1 = arith.constant 0 : i32
    return %c0_i32, %c0_i32_0 : i32, i32
  }
  func.func @transform_2(%arg0: i32) -> (i32, i32) {
    %c0_i32 = arith.constant 0 : i32
    %c0_i32_0 = arith.constant 0 : i32
    %c0_i32_1 = arith.constant 0 : i32
    return %c0_i32, %c0_i32_0 : i32, i32
  }
  func.func @transform_3(%arg0: i32) -> (i32, i32) {
    %c0_i32 = arith.constant 0 : i32
    %c0_i32_0 = arith.constant 0 : i32
    %c0_i32_1 = arith.constant 0 : i32
    return %c0_i32, %c0_i32_0 : i32, i32
  }
  func.func @transform_4(%arg0: i32) -> (i32, i32) {
    %c0_i32 = arith.constant 0 : i32
    %c0_i32_0 = arith.constant 0 : i32
    %c0_i32_1 = arith.constant 0 : i32
    return %c0_i32, %c0_i32_0 : i32, i32
  }
  func.func @transform_5(%arg0: i32) -> (i32, i32) {
    %c0_i32 = arith.constant 0 : i32
    %c0_i32_0 = arith.constant 0 : i32
    return %arg0, %c0_i32 : i32, i32
  }
}

</mosaic_0001>

<llo_original>
// kernel: tpu_custom_call.1
$region0: #{tpu_custom_call.1}
  #allocation0 [shape = 'u32[]', space=smem, size = 0x4, offset = 0x4, fixed_abs, tag = 'smem constant byte address 0x4 - core index']
  #allocation1 [shape = 'u32[144,128]{1,0:T(1,128)}', space=vmem, size = 0x12000, scoped, tag = 'internal scratch']
  %s0 = inlined_call_operand.vmem [shape: f32[8,4], index: 0, kind: input, shape index: {}]
  %s1 = inlined_call_operand.vmem [shape: f32[4,128], index: 1, kind: input, shape index: {}]
  %s2 = inlined_call_operand.hbm [shape: f32[128,128], index: 2, kind: input, shape index: {}]
  %s3 = inlined_call_operand.hbm [shape: f32[128,128], index: 3, kind: input, shape index: {}]
  %s4 = inlined_call_operand.vmem [shape: f32[3,128], index: 4, kind: input, shape index: {}]
  %s5 = inlined_call_operand.hbm [shape: f32[8,128], index: 5, kind: output, shape index: {}]
  %s6 = sld [smem:[#allocation0]]
  $region38: #{tpu_custom_call.1} parent=0
    _
  %s8 = ssub.s32 1, %s6
  %s9 = scalar_select 0, %s8, %s6
  $region1: #{tpu_custom_call.1} parent=0
    #allocation2 [shape = 'u8[65536]{0}', space=vmem, size = 0x10000, scoped, tag = 'input window, operand 2, single buffered']
    #allocation3 [shape = 's32[1]{0}', space=sflag, size = 0x4, scoped, tag = 'scoped memory for tpu_custom_call.1']
    #allocation4 [shape = 's32[1]{0}', space=sflag, size = 0x4, scoped, tag = 'scoped memory for tpu_custom_call.1']
    #allocation5 [shape = 'u8[65536]{0}', space=vmem, size = 0x10000, scoped, tag = 'input window, operand 3, single buffered']
    #allocation6 [shape = 's32[1]{0}', space=sflag, size = 0x4, scoped, tag = 'scoped memory for tpu_custom_call.1']
    #allocation7 [shape = 'u8[4096]{0}', space=vmem, size = 0x1000, scoped, tag = 'output window, operand 0, single buffered']
    %10 = vsyncpa [#allocation3], 0
    %11 = vsyncpa [#allocation6], 0
    %12 = vsyncpa [#allocation4], 0
    // Predicated region
    $region2: #{tpu_custom_call.1} parent=1 // pred_check
      _
    $region3: #{tpu_custom_call.1} parent=1 // pred_check_branch
      %14 = sbr.rel (0) target = $region5
    $region4: #{tpu_custom_call.1} parent=1 // pred_region
      _
    $region5: #{tpu_custom_call.1} parent=1 // pred_fallthru
      _
    // Predicated region
    $region6: #{tpu_custom_call.1} parent=1 // pred_check
      _
    $region7: #{tpu_custom_call.1} parent=1 // pred_check_branch
      %16 = sbr.rel (0) target = $region9
    $region8: #{tpu_custom_call.1} parent=1 // pred_region
      _
    $region9: #{tpu_custom_call.1} parent=1 // pred_fallthru
      _
    // Predicated region
    $region10: #{tpu_custom_call.1} parent=1 // pred_check
      _
    $region11: #{tpu_custom_call.1} parent=1 // pred_check_branch
      %18 = sbr.rel (0) target = $region13
    $region12: #{tpu_custom_call.1} parent=1 // pred_region
      %s20 = ssub.s32 2048, 2048
      %21 = vsyncadd [#allocation3], %s20
      %s22 = sshll.u32 [#allocation2], 4
      %s23 = int_to_ptr.vmem [resolvable:$true] %s22
      %28 = dma.hbm_to_vmem [thread:$0]  %s2, 2048, %s23, [#allocation3], 128, 128, 8
    $region13: #{tpu_custom_call.1} parent=1 // pred_fallthru
      _
    // Predicated region
    $region14: #{tpu_custom_call.1} parent=1 // pred_check
      _
    $region15: #{tpu_custom_call.1} parent=1 // pred_check_branch
      %30 = sbr.rel (0) target = $region17
    $region16: #{tpu_custom_call.1} parent=1 // pred_region
      %s32 = ssub.s32 2048, 2048
      %33 = vsyncadd [#allocation6], %s32
      %s34 = sshll.u32 [#allocation5], 4
      %s35 = int_to_ptr.vmem [resolvable:$true] %s34
      %40 = dma.hbm_to_vmem [thread:$0]  %s3, 2048, %s35, [#allocation6], 128, 128, 8
    $region17: #{tpu_custom_call.1} parent=1 // pred_fallthru
      _
    // Predicated region
    $region18: #{tpu_custom_call.1} parent=1 // pred_check
      _
    $region19: #{tpu_custom_call.1} parent=1 // pred_check_branch
      %42 = sbr.rel (0) target = $region21
    $region20: #{tpu_custom_call.1} parent=1 // pred_region
      _
    $region21: #{tpu_custom_call.1} parent=1 // pred_fallthru
      _
    // Predicated region
    $region22: #{tpu_custom_call.1} parent=1 // pred_check
      _
    $region23: #{tpu_custom_call.1} parent=1 // pred_check_branch
      %44 = sbr.rel (0) target = $region25
    $region24: #{tpu_custom_call.1} parent=1 // pred_region
      %45 = dma.done [#allocation3], 2048
    $region25: #{tpu_custom_call.1} parent=1 // pred_fallthru
      _
    // Predicated region
    $region26: #{tpu_custom_call.1} parent=1 // pred_check
      _
    $region27: #{tpu_custom_call.1} parent=1 // pred_check_branch
      %47 = sbr.rel (0) target = $region29
    $region28: #{tpu_custom_call.1} parent=1 // pred_region
      %48 = dma.done [#allocation6], 2048
    $region29: #{tpu_custom_call.1} parent=1 // pred_fallthru
      _
    %v49 = vld [vmem:[%s0] sm:$0xff]
    %v50 = vld [vmem:[%s4] sm:$0x1]
    %v51 = vld [vmem:[%s4 + $0x1] sm:$0x1]
    %v52 = vld [vmem:[%s4 + $0x2] sm:$0x1]
    %v53 = vld [vmem:[%s1] sm:$0xf]
    %v54 = vlaneseq
    %v55 = vshrl.u32 %v54, 7
    %v56 = vsub.s32 0, %v55
    %v57 = vrot.slane %v50, %v56
    %vm58 = vcmask 31744
    %v60 = vsel %vm58, %v49, 0
    %vm62 = vcmask 1043456
    %v64 = vsel %vm62, %v53, 0
    %66 = vmatprep.subr.mxu0 0.0
    %67 = vmatpush1.msra.mxu0 %v64
    %68 = vmatprep.subr.mxu0 0.0
    %69 = vmatpush1.msra.mxu0 0.0
    %70 = vmatprep.subr.mxu0 0.0
    %71 = vmatpush1.msra.mxu0 0.0
    %72 = vmatprep.subr.mxu0 0.0
    %73 = vmatpush1.msra.mxu0 0.0
    %74 = vmatprep.subr.mxu0 0.0
    %75 = vmatpush1.msra.mxu0 0.0
    %76 = vmatprep.subr.mxu0 0.0
    %77 = vmatpush1.msra.mxu0 0.0
    %78 = vmatprep.subr.mxu0 0.0
    %79 = vmatpush1.msra.mxu0 0.0
    %80 = vmatprep.subr.mxu0 0.0
    %81 = vmatpush1.msra.mxu0 0.0
    %82 = vmatprep.subr.mxu0 0.0
    %83 = vmatpush1.msra.mxu0 0.0
    %84 = vmatprep.subr.mxu0 0.0
    %85 = vmatpush1.msra.mxu0 0.0
    %86 = vmatprep.subr.mxu0 0.0
    %87 = vmatpush1.msra.mxu0 0.0
    %88 = vmatprep.subr.mxu0 0.0
    %89 = vmatpush1.msra.mxu0 0.0
    %90 = vmatprep.subr.mxu0 0.0
    %91 = vmatpush1.msra.mxu0 0.0
    %92 = vmatprep.subr.mxu0 0.0
    %93 = vmatpush1.msra.mxu0 0.0
    %94 = vmatprep.subr.mxu0 0.0
    %95 = vmatpush1.msra.mxu0 0.0
    %96 = vmatprep.subr.mxu0 0.0
    %97 = vmatpush1.msra.mxu0 0.0
    %98 = vmatprep.subr.mxu0 0.0
    %99 = vmatpush1.msra.mxu0 0.0
    %100 = vmatprep.subr.mxu0 0.0
    %101 = vmatpush1.msra.mxu0 0.0
    %102 = vmatprep.subr.mxu0 0.0
    %103 = vmatpush1.msra.mxu0 0.0
    %104 = vmatprep.subr.mxu0 0.0
    %105 = vmatpush1.msra.mxu0 0.0
    %106 = vmatprep.subr.mxu0 0.0
    %107 = vmatpush1.msra.mxu0 0.0
    %108 = vmatprep.subr.mxu0 0.0
    %109 = vmatpush1.msra.mxu0 0.0
    %110 = vmatprep.subr.mxu0 0.0
    %111 = vmatpush1.msra.mxu0 0.0
    %112 = vmatprep.subr.mxu0 0.0
    %113 = vmatpush1.msra.mxu0 0.0
    %114 = vmatprep.subr.mxu0 0.0
    %115 = vmatpush1.msra.mxu0 0.0
    %116 = vmatprep.subr.mxu0 0.0
    %117 = vmatpush1.msra.mxu0 0.0
    %118 = vmatprep.subr.mxu0 0.0
    %119 = vmatpush1.msra.mxu0 0.0
    %120 = vmatprep.subr.mxu0 0.0
    %121 = vmatpush1.msra.mxu0 0.0
    %122 = vmatprep.subr.mxu0 0.0
    %123 = vmatpush1.msra.mxu0 0.0
    %124 = vmatprep.subr.mxu0 0.0
    %125 = vmatpush1.msra.mxu0 0.0
    %126 = vmatprep.subr.mxu0 0.0
    %127 = vmatpush1.msra.mxu0 0.0
    %128 = vmatprep.subr.mxu0 0.0
    %129 = vmatpush1.msra.mxu0 0.0
    %130 = vmatprep.mubr.f32.mxu0 0.0
    %131 = vmatmul.mubr.f32.gmra.mrb[0].mxu0 %v60
    %v132 = vpop.f32.mrb[0].mxu0
    %v133 = vadd.f32 %v57, %v132
    %v134 = vpop.f32.mrb[0].mxu0
    %135 = vdwg.mxu0
    %v136 = vmax.f32 %v133, 0.0
    %v137 = vld [vmem:[#allocation2] sm:$0xff]
    %v138 = vld [vmem:[#allocation2 + $0x8] sm:$0xff]
    %v139 = vld [vmem:[#allocation2 + $0x10] sm:$0xff]
    %v140 = vld [vmem:[#allocation2 + $0x18] sm:$0xff]
    %v141 = vld [vmem:[#allocation2 + $0x20] sm:$0xff]
    %v142 = vld [vmem:[#allocation2 + $0x28] sm:$0xff]
    %v143 = vld [vmem:[#allocation2 + $0x30] sm:$0xff]
    %v144 = vld [vmem:[#allocation2 + $0x38] sm:$0xff]
    %v145 = vld [vmem:[#allocation2 + $0x40] sm:$0xff]
    %v146 = vld [vmem:[#allocation2 + $0x48] sm:$0xff]
    %v147 = vld [vmem:[#allocation2 + $0x50] sm:$0xff]
    %v148 = vld [vmem:[#allocation2 + $0x58] sm:$0xff]
    %v149 = vld [vmem:[#allocation2 + $0x60] sm:$0xff]
    %v150 = vld [vmem:[#allocation2 + $0x68] sm:$0xff]
    %v151 = vld [vmem:[#allocation2 + $0x70] sm:$0xff]
    %v152 = vld [vmem:[#allocation2 + $0x78] sm:$0xff]
    %v153 = vlaneseq
    %v154 = vshrl.u32 %v153, 7
    %v155 = vsub.s32 0, %v154
    %v156 = vrot.slane %v51, %v155
    %157 = vmatprep.subr.mxu0 0.0
    %158 = vmatpush1.msra.mxu0 %v137
    %159 = vmatprep.subr.mxu0 0.0
    %160 = vmatpush1.msra.mxu0 %v138
    %161 = vmatprep.subr.mxu0 0.0
    %162 = vmatpush1.msra.mxu0 %v139
    %163 = vmatprep.subr.mxu0 0.0
    %164 = vmatpush1.msra.mxu0 %v140
    %165 = vmatprep.subr.mxu0 0.0
    %166 = vmatpush1.msra.mxu0 %v141
    %167 = vmatprep.subr.mxu0 0.0
    %168 = vmatpush1.msra.mxu0 %v142
    %169 = vmatprep.subr.mxu0 0.0
    %170 = vmatpush1.msra.mxu0 %v143
    %171 = vmatprep.subr.mxu0 0.0
    %172 = vmatpush1.msra.mxu0 %v144
    %173 = vmatprep.subr.mxu0 0.0
    %174 = vmatpush1.msra.mxu0 %v145
    %175 = vmatprep.subr.mxu0 0.0
    %176 = vmatpush1.msra.mxu0 %v146
    %177 = vmatprep.subr.mxu0 0.0
    %178 = vmatpush1.msra.mxu0 %v147
    %179 = vmatprep.subr.mxu0 0.0
    %180 = vmatpush1.msra.mxu0 %v148
    %181 = vmatprep.subr.mxu0 0.0
    %182 = vmatpush1.msra.mxu0 %v149
    %183 = vmatprep.subr.mxu0 0.0
    %184 = vmatpush1.msra.mxu0 %v150
    %185 = vmatprep.subr.mxu0 0.0
    %186 = vmatpush1.msra.mxu0 %v151
    %187 = vmatprep.subr.mxu0 0.0
    %188 = vmatpush1.msra.mxu0 %v152
    %189 = vmatprep.subr.mxu0 0.0
    %190 = vmatpush1.msra.mxu0 0.0
    %191 = vmatprep.subr.mxu0 0.0
    %192 = vmatpush1.msra.mxu0 0.0
    %193 = vmatprep.subr.mxu0 0.0
    %194 = vmatpush1.msra.mxu0 0.0
    %195 = vmatprep.subr.mxu0 0.0
    %196 = vmatpush1.msra.mxu0 0.0
    %197 = vmatprep.subr.mxu0 0.0
    %198 = vmatpush1.msra.mxu0 0.0
    %199 = vmatprep.subr.mxu0 0.0
    %200 = vmatpush1.msra.mxu0 0.0
    %201 = vmatprep.subr.mxu0 0.0
    %202 = vmatpush1.msra.mxu0 0.0
    %203 = vmatprep.subr.mxu0 0.0
    %204 = vmatpush1.msra.mxu0 0.0
    %205 = vmatprep.subr.mxu0 0.0
    %206 = vmatpush1.msra.mxu0 0.0
    %207 = vmatprep.subr.mxu0 0.0
    %208 = vmatpush1.msra.mxu0 0.0
    %209 = vmatprep.subr.mxu0 0.0
    %210 = vmatpush1.msra.mxu0 0.0
    %211 = vmatprep.subr.mxu0 0.0
    %212 = vmatpush1.msra.mxu0 0.0
    %213 = vmatprep.subr.mxu0 0.0
    %214 = vmatpush1.msra.mxu0 0.0
    %215 = vmatprep.subr.mxu0 0.0
    %216 = vmatpush1.msra.mxu0 0.0
    %217 = vmatprep.subr.mxu0 0.0
    %218 = vmatpush1.msra.mxu0 0.0
    %219 = vmatprep.subr.mxu0 0.0
    %220 = vmatpush1.msra.mxu0 0.0
    %221 = vmatprep.mubr.f32.mxu0 0.0
    %222 = vmatmul.mubr.f32.gmra.mrb[0].mxu0 %v136
    %v223 = vpop.f32.mrb[0].mxu0
    %v224 = vadd.f32 %v156, %v223
    %v225 = vpop.f32.mrb[0].mxu0
    %226 = vdwg.mxu0
    %v227 = vmax.f32 %v224, 0.0
    %v228 = vld [vmem:[#allocation5] sm:$0xff]
    %v229 = vld [vmem:[#allocation5 + $0x8] sm:$0xff]
    %v230 = vld [vmem:[#allocation5 + $0x10] sm:$0xff]
    %v231 = vld [vmem:[#allocation5 + $0x18] sm:$0xff]
    %v232 = vld [vmem:[#allocation5 + $0x20] sm:$0xff]
    %v233 = vld [vmem:[#allocation5 + $0x28] sm:$0xff]
    %v234 = vld [vmem:[#allocation5 + $0x30] sm:$0xff]
    %v235 = vld [vmem:[#allocation5 + $0x38] sm:$0xff]
    %v236 = vld [vmem:[#allocation5 + $0x40] sm:$0xff]
    %v237 = vld [vmem:[#allocation5 + $0x48] sm:$0xff]
    %v238 = vld [vmem:[#allocation5 + $0x50] sm:$0xff]
    %v239 = vld [vmem:[#allocation5 + $0x58] sm:$0xff]
    %v240 = vld [vmem:[#allocation5 + $0x60] sm:$0xff]
    %v241 = vld [vmem:[#allocation5 + $0x68] sm:$0xff]
    %v242 = vld [vmem:[#allocation5 + $0x70] sm:$0xff]
    %v243 = vld [vmem:[#allocation5 + $0x78] sm:$0xff]
    %v244 = vlaneseq
    %v245 = vshrl.u32 %v244, 7
    %v246 = vsub.s32 0, %v245
    %v247 = vrot.slane %v52, %v246
    %248 = vmatprep.subr.mxu0 0.0
    %249 = vmatpush1.msra.mxu0 %v228
    %250 = vmatprep.subr.mxu0 0.0
    %251 = vmatpush1.msra.mxu0 %v229
    %252 = vmatprep.subr.mxu0 0.0
    %253 = vmatpush1.msra.mxu0 %v230
    %254 = vmatprep.subr.mxu0 0.0
    %255 = vmatpush1.msra.mxu0 %v231
    %256 = vmatprep.subr.mxu0 0.0
    %257 = vmatpush1.msra.mxu0 %v232
    %258 = vmatprep.subr.mxu0 0.0
    %259 = vmatpush1.msra.mxu0 %v233
    %260 = vmatprep.subr.mxu0 0.0
    %261 = vmatpush1.msra.mxu0 %v234
    %262 = vmatprep.subr.mxu0 0.0
    %263 = vmatpush1.msra.mxu0 %v235
    %264 = vmatprep.subr.mxu0 0.0
    %265 = vmatpush1.msra.mxu0 %v236
    %266 = vmatprep.subr.mxu0 0.0
    %267 = vmatpush1.msra.mxu0 %v237
    %268 = vmatprep.subr.mxu0 0.0
    %269 = vmatpush1.msra.mxu0 %v238
    %270 = vmatprep.subr.mxu0 0.0
    %271 = vmatpush1.msra.mxu0 %v239
    %272 = vmatprep.subr.mxu0 0.0
    %273 = vmatpush1.msra.mxu0 %v240
    %274 = vmatprep.subr.mxu0 0.0
    %275 = vmatpush1.msra.mxu0 %v241
    %276 = vmatprep.subr.mxu0 0.0
    %277 = vmatpush1.msra.mxu0 %v242
    %278 = vmatprep.subr.mxu0 0.0
    %279 = vmatpush1.msra.mxu0 %v243
    %280 = vmatprep.subr.mxu0 0.0
    %281 = vmatpush1.msra.mxu0 0.0
    %282 = vmatprep.subr.mxu0 0.0
    %283 = vmatpush1.msra.mxu0 0.0
    %284 = vmatprep.subr.mxu0 0.0
    %285 = vmatpush1.msra.mxu0 0.0
    %286 = vmatprep.subr.mxu0 0.0
    %287 = vmatpush1.msra.mxu0 0.0
    %288 = vmatprep.subr.mxu0 0.0
    %289 = vmatpush1.msra.mxu0 0.0
    %290 = vmatprep.subr.mxu0 0.0
    %291 = vmatpush1.msra.mxu0 0.0
    %292 = vmatprep.subr.mxu0 0.0
    %293 = vmatpush1.msra.mxu0 0.0
    %294 = vmatprep.subr.mxu0 0.0
    %295 = vmatpush1.msra.mxu0 0.0
    %296 = vmatprep.subr.mxu0 0.0
    %297 = vmatpush1.msra.mxu0 0.0
    %298 = vmatprep.subr.mxu0 0.0
    %299 = vmatpush1.msra.mxu0 0.0
    %300 = vmatprep.subr.mxu0 0.0
    %301 = vmatpush1.msra.mxu0 0.0
    %302 = vmatprep.subr.mxu0 0.0
    %303 = vmatpush1.msra.mxu0 0.0
    %304 = vmatprep.subr.mxu0 0.0
    %305 = vmatpush1.msra.mxu0 0.0
    %306 = vmatprep.subr.mxu0 0.0
    %307 = vmatpush1.msra.mxu0 0.0
    %308 = vmatprep.subr.mxu0 0.0
    %309 = vmatpush1.msra.mxu0 0.0
    %310 = vmatprep.subr.mxu0 0.0
    %311 = vmatpush1.msra.mxu0 0.0
    %312 = vmatprep.mubr.f32.mxu0 0.0
    %313 = vmatmul.mubr.f32.gmra.mrb[0].mxu0 %v227
    %v314 = vpop.f32.mrb[0].mxu0
    %v315 = vadd.f32 %v247, %v314
    %v316 = vpop.f32.mrb[0].mxu0
    %317 = vdwg.mxu0
    %v318 = vtanh.pop %v315
    %319 = vst [vmem:[#allocation7] sm:$0xff] %v318
    // Predicated region
    $region30: #{tpu_custom_call.1} parent=1 // pred_check
      _
    $region31: #{tpu_custom_call.1} parent=1 // pred_check_branch
      %321 = sbr.rel (0) target = $region33
    $region32: #{tpu_custom_call.1} parent=1 // pred_region
      %s323 = ssub.s32 128, 128
      %324 = vsyncadd [#allocation4], %s323
      %s326 = sshll.u32 [#allocation7], 4
      %s327 = int_to_ptr.vmem [resolvable:$true] %s326
      %329 = dma.vmem_to_hbm [thread:$0]  %s327, 128, %s5, [#allocation4]
    $region33: #{tpu_custom_call.1} parent=1 // pred_fallthru
      _
    // Predicated region
    $region34: #{tpu_custom_call.1} parent=1 // pred_check
      _
    $region35: #{tpu_custom_call.1} parent=1 // pred_check_branch
      %331 = sbr.rel (0) target = $region37
    $region36: #{tpu_custom_call.1} parent=1 // pred_region
      %332 = dma.done [#allocation4], 128
    $region37: #{tpu_custom_call.1} parent=1 // pred_fallthru
      _
    %333 = vsyncpa [#allocation3], 1
    %334 = vsyncpa [#allocation6], 1
    %335 = vsyncpa [#allocation4], 1

</llo_original>
